<compile_context>
chip_gen: v5e
topology: v5e:2x2
jax: 0.10.0
libtpu: 0.0.40
codegen_flags: <defaults>
</compile_context>

<pallas_src>
import functools

import jax
import jax.numpy as jnp
from jax.experimental import pallas as pl
from jax.experimental.pallas import tpu as pltpu


def _round_up(x, m):
    return ((x + m - 1) // m) * m


def _cdiv(a, b):
    return (a + b - 1) // b


def _xent_loss_kernel(x_ref, w_ref, t_ref, o_ref, m_ref, l_ref, tgt_ref, *,
                      v_total, tv):
    """Fused linear + cross-entropy with online softmax over vocab tiles.

    x_ref  : (TN, H)  bf16  VMEM   row tile of flattened input features
    w_ref  : (H, TV)  bf16  VMEM   vocab tile of the projection weight
    t_ref  : (TN, 1)  int32 VMEM   target ids for this row tile
    o_ref  : (TN, 1)  f32   VMEM   per-token loss (written at last V tile)
    m_ref  : (TN, 1)  f32   VMEM scratch  running max
    l_ref  : (TN, 1)  f32   VMEM scratch  running sum of exp
    tgt_ref: (TN, 1)  f32   VMEM scratch  running target logit
    """
    v = pl.program_id(1)
    nv = pl.num_programs(1)

    @pl.when(v == 0)
    def _():
        m_ref[...] = jnp.full_like(m_ref, -jnp.inf)
        l_ref[...] = jnp.zeros_like(l_ref)
        tgt_ref[...] = jnp.zeros_like(tgt_ref)

    def update(mask_tail):
        # MXU: (TN, H) bf16 x (H, TV) bf16 -> (TN, TV) f32 accumulate.
        logits = jnp.dot(x_ref[...], w_ref[...],
                         preferred_element_type=jnp.float32)

        # Global vocab column ids for this tile.
        col = v * tv + jax.lax.broadcasted_iota(jnp.int32, logits.shape, 1)
        if mask_tail:
            # Ragged last vocab tile: columns >= v_total hold whatever the
            # boundary DMA fetched; force them to -inf before max/sum/select.
            logits = jnp.where(col < v_total, logits, -jnp.inf)

        # Online softmax (log-sum-exp) update across vocab tiles.
        m_old = m_ref[...]
        m_new = jnp.maximum(m_old, jnp.max(logits, axis=-1, keepdims=True))
        # Guard: exp(-inf - -inf) = NaN if a row's running max is still -inf
        # after this tile. Unreachable for valid rows with the current tiling
        # (tile 0 always covers real vocab columns) but cheap on a (TN,1).
        alpha = jnp.where(m_new == -jnp.inf, 0.0, jnp.exp(m_old - m_new))
        p = jnp.exp(logits - m_new)
        l_ref[...] = alpha * l_ref[...] + jnp.sum(p, axis=-1, keepdims=True)
        m_ref[...] = m_new

        # Target logit: masked select-sum (no one-hot materialization).
        # TODO(synk): target ids are assumed in [0, V); out-of-range ids match
        # no column and yield +inf loss rather than an error.
        tgt_ref[...] += jnp.sum(
            jnp.where(col == t_ref[...], logits, 0.0),
            axis=-1, keepdims=True)

    if v_total % tv == 0:
        # Vocab divides evenly: never emit the compare+select VPU passes.
        update(False)
    else:
        # Only the last vocab tile needs the tail mask; gate it at runtime so
        # earlier tiles skip the extra VPU work entirely.
        @pl.when(v < nv - 1)
        def _():
            update(False)

        @pl.when(v == nv - 1)
        def _():
            update(True)

    @pl.when(v == nv - 1)
    def _():
        o_ref[...] = m_ref[...] + jnp.log(l_ref[...]) - tgt_ref[...]


def _tile_defaults():
    """Generation-aware (device_kind, tn, tv, vmem_limit_bytes)."""
    kind = ""
    try:
        kind = jax.devices()[0].device_kind.lower()
    except Exception:  # pragma: no cover - defensive; fall back below.
        pass

    if "v7" in kind:
        # 64 MiB VMEM per TC, 3.2 TB/s HBM: ~310 flops/byte reaches MXU-bound
        # with modest tiles; stay well under the per-core VMEM.
        return kind, 512, 1024, 48 * 1024 * 1024
    if "v6" in kind:
        # 918 TF/s vs ~1.4 TB/s -> ~640 flops/byte needed on the W stream, so
        # a big row tile; 128 MiB VMEM allows a ~96 MiB scoped limit.
        return kind, 1024, 1024, 96 * 1024 * 1024
    # v5e (and older/unknown): 197 TF/s vs ~0.82 TB/s -> tn ~256-384 suffices;
    # large tv mainly cuts per-grid-step overhead. 128 MiB VMEM.
    return kind, 384, 1024, 96 * 1024 * 1024


def abstract_model_forward(input_seq, target_seq, weight, *, tn=None, tv=None,
                           vmem_limit_bytes=None):
    """Concrete realization of AbstractModel.forward: returns scalar mean loss.

    input_seq : [B, S, H] float
    target_seq: [B, S]    int (class ids in [0, V))
    weight    : [H, V]    float
    """
    B, S, H = input_seq.shape
    V = weight.shape[1]
    N = B * S

    kind, tn_d, tv_d, vmem_d = _tile_defaults()
    auto_tiles = tn is None
    if tn is None:
        tn = tn_d
    if tv is None:
        tv = tv_d
    if vmem_limit_bytes is None:
        vmem_limit_bytes = vmem_d

    # Rows: multiple of 8 (sublanes); vocab: multiple of 128 (lanes). Clamp to
    # the (rounded-up) problem size so tiny problems get a single tile.
    tn = _round_up(min(tn, _round_up(N, 8)), 8)
    tv = _round_up(min(tv, _round_up(V, 128)), 128)

    if auto_tiles and "v7" in kind and N > tn:
        # Keep an even row-tile count so both v7x TensorCores stay busy.
        n_tiles = _cdiv(N, tn)
        if n_tiles > 1 and n_tiles % 2 == 1:
            tn = _round_up(_cdiv(N, n_tiles + 1), 8)

    grid = (_cdiv(N, tn), _cdiv(V, tv))

    # bf16 MXU operands (f32 accumulation in-kernel), cast only — no padding,
    # so no extra full HBM pass over the weight before the kernel runs.
    # TODO(synk): bf16 operands deviate slightly from a pure-f32 torch
    # cross-entropy; the abstract spec fixes no dtype policy, so we take the
    # MXU-native one (the reference below applies the same policy).
    x = input_seq.reshape(N, H).astype(jnp.bfloat16)
    w = weight.astype(jnp.bfloat16)
    t = target_seq.reshape(N, 1).astype(jnp.int32)

    kernel = functools.partial(_xent_loss_kernel, v_total=V, tv=tv)

    # W is the only per-step DMA stream; on v6e (memory-bound generation) use
    # 3-deep buffering when the vocab loop is long enough to benefit.
    if "v6" in kind and grid[1] >= 4:
        w_spec = pl.BlockSpec((H, tv), lambda i, v: (0, v),
                              pipeline_mode=pl.Buffered(3))
    else:
        w_spec = pl.BlockSpec((H, tv), lambda i, v: (0, v))

    per_token = pl.pallas_call(
        kernel,
        out_shape=jax.ShapeDtypeStruct((N, 1), jnp.float32),
        grid_spec=pltpu.PrefetchScalarGridSpec(
            num_scalar_prefetch=0,
            grid=grid,
            in_specs=[
                pl.BlockSpec((tn, H), lambda i, v: (i, 0)),   # x row tile
                w_spec,                                        # W vocab tile
                pl.BlockSpec((tn, 1), lambda i, v: (i, 0)),   # targets
            ],
            out_specs=pl.BlockSpec((tn, 1), lambda i, v: (i, 0)),
            scratch_shapes=[
                pltpu.VMEM((tn, 1), jnp.float32),   # running max m
                pltpu.VMEM((tn, 1), jnp.float32),   # running sum-of-exp l
                pltpu.VMEM((tn, 1), jnp.float32),   # running target logit
            ],
        ),
        compiler_params=pltpu.CompilerParams(
            dimension_semantics=("parallel", "arbitrary"),
            vmem_limit_bytes=vmem_limit_bytes,
        ),
        cost_estimate=pl.CostEstimate(
            flops=2 * (grid[0] * tn) * H * (grid[1] * tv),
            transcendentals=(grid[0] * tn) * (grid[1] * tv),
            bytes_accessed=(N * H * 2               # x (bf16), read once
                            + grid[0] * H * V * 2  # W (bf16) re-read per row tile
                            + N * 4                # targets
                            + N * 4),              # per-token losses
        ),
    )(x, w, t)

    # TODO(synk): the abstract module defines no ignore_index / padding-token
    # masking semantics; every token contributes to the mean.
    return jnp.mean(per_token[:, 0])


def _reference_loss(input_seq, target_seq, weight):
    """Pure-JAX reference with the same bf16-operand / f32-accumulate policy."""
    B, S, H = input_seq.shape
    N = B * S
    x = input_seq.reshape(N, H).astype(jnp.bfloat16).astype(jnp.float32)
    w = weight.astype(jnp.bfloat16).astype(jnp.float32)
    logits = x @ w
    lse = jax.nn.logsumexp(logits, axis=-1)
    tgt = jnp.take_along_axis(logits, target_seq.reshape(N, 1), axis=-1)[:, 0]
    return jnp.mean(lse - tgt)


if __name__ == "__main__":
    # Small deterministic shapes: batch=2, seq=7, hidden=32, vocab=384.
    B, S, H, V = 2, 7, 32, 384

    key = jax.random.PRNGKey(0)
    k_x, k_t, k_w = jax.random.split(key, 3)

    input_seq = jax.random.normal(k_x, (B, S, H), dtype=jnp.float32)
    target_seq = jax.random.randint(k_t, (B, S), 0, V, dtype=jnp.int32)
    weight = jax.random.normal(k_w, (H, V), dtype=jnp.float32) / jnp.sqrt(H)

    ref = _reference_loss(input_seq, target_seq, weight)

    # (a) multiple row tiles with ragged rows (14 of 16) and multiple vocab
    #     tiles with a ragged, masked tail (384 % 256 != 0).
    loss_a = abstract_model_forward(input_seq, target_seq, weight, tn=8, tv=256)
    # (b) multiple vocab tiles, evenly divided (no tail-mask code emitted).
    loss_b = abstract_model_forward(input_seq, target_seq, weight, tn=8, tv=128)
    # (c) generation-specific defaults (single tile after clamping).
    loss_c = abstract_model_forward(input_seq, target_seq, weight)

    loss_a, loss_b, loss_c = jax.block_until_ready((loss_a, loss_b, loss_c))

    for name, got in (("a", loss_a), ("b", loss_b), ("c", loss_c)):
        assert jnp.allclose(got, ref, rtol=1e-4, atol=1e-4), (name, got, ref)

    print("KERNEL_OK")
</pallas_src>

<mosaic_0001>
module attributes {stable_mosaic.version = 11 : i64} {
  func.func @_xent_loss_kernel(%arg0: i32, %arg1: i32, %arg2: memref<8x32xbf16, #tpu.memory_space<vmem>>, %arg3: memref<32x256xbf16, #tpu.memory_space<vmem>>, %arg4: memref<8x1xi32, #tpu.memory_space<vmem>>, %arg5: memref<8x1xf32, #tpu.memory_space<vmem>>, %arg6: memref<8x1xf32, #tpu.memory_space<vmem>>, %arg7: memref<8x1xf32, #tpu.memory_space<vmem>>, %arg8: memref<8x1xf32, #tpu.memory_space<vmem>>) attributes {dimension_semantics = [#tpu.dimension_semantics<parallel>, #tpu.dimension_semantics<arbitrary>], iteration_bounds = array<i64: 2, 2>, scalar_prefetch = 0 : i64, scratch_operands = 3 : i64, tpu.core_type = #tpu.core_type<tc>, window_params = [{transform_indices = @transform_0, window_bounds = array<i64: 8, 32>}, {transform_indices = @transform_1, window_bounds = array<i64: 32, 256>}, {transform_indices = @transform_2, window_bounds = array<i64: 8, 1>}, {transform_indices = @transform_3, window_bounds = array<i64: 8, 1>}]} {
    %c0_i32 = arith.constant 0 : i32
    %0 = arith.cmpi eq, %arg1, %c0_i32 : i32
    %1 = arith.extui %0 : i1 to i32
    %c0_i32_0 = arith.constant 0 : i32
    %2 = arith.cmpi ne, %1, %c0_i32_0 : i32
    scf.if %2 {
      %cst = arith.constant 0xFF800000 : f32
      %12 = vector.broadcast %cst : f32 to vector<8x1xf32>
      %c0 = arith.constant 0 : index
      %c0_6 = arith.constant 0 : index
      %13 = vector.load %arg6[%c0, %c0_6] : memref<8x1xf32, #tpu.memory_space<vmem>>, vector<8x1xf32>
      tpu.vector_store %arg6[%c0, %c0_6], %12 {strides = array<i32>} : memref<8x1xf32, #tpu.memory_space<vmem>>, vector<8x1xf32>,
      %cst_7 = arith.constant 0.000000e+00 : f32
      %14 = vector.broadcast %cst_7 : f32 to vector<8x1xf32>
      %c0_8 = arith.constant 0 : index
      %c0_9 = arith.constant 0 : index
      %15 = vector.load %arg7[%c0_8, %c0_9] : memref<8x1xf32, #tpu.memory_space<vmem>>, vector<8x1xf32>
      tpu.vector_store %arg7[%c0_8, %c0_9], %14 {strides = array<i32>} : memref<8x1xf32, #tpu.memory_space<vmem>>, vector<8x1xf32>,
      %cst_10 = arith.constant 0.000000e+00 : f32
      %16 = vector.broadcast %cst_10 : f32 to vector<8x1xf32>
      %c0_11 = arith.constant 0 : index
      %c0_12 = arith.constant 0 : index
      %17 = vector.load %arg8[%c0_11, %c0_12] : memref<8x1xf32, #tpu.memory_space<vmem>>, vector<8x1xf32>
      tpu.vector_store %arg8[%c0_11, %c0_12], %16 {strides = array<i32>} : memref<8x1xf32, #tpu.memory_space<vmem>>, vector<8x1xf32>,
    } else {
    }
    %c1_i32 = arith.constant 1 : i32
    %3 = arith.cmpi slt, %arg1, %c1_i32 : i32
    %4 = arith.extui %3 : i1 to i32
    %c0_i32_1 = arith.constant 0 : i32
    %5 = arith.cmpi ne, %4, %c0_i32_1 : i32
    scf.if %5 {
      %c0 = arith.constant 0 : index
      %c0_6 = arith.constant 0 : index
      %12 = vector.load %arg2[%c0, %c0_6] : memref<8x32xbf16, #tpu.memory_space<vmem>>, vector<8x32xbf16>
      %c0_7 = arith.constant 0 : index
      %c0_8 = arith.constant 0 : index
      %13 = vector.load %arg3[%c0_7, %c0_8] : memref<32x256xbf16, #tpu.memory_space<vmem>>, vector<32x256xbf16>
      %cst = arith.constant dense<0.000000e+00> : vector<8x256xf32>
      %14 = tpu.matmul %12, %13, %cst {dimension_numbers = #tpu.dot_dimension_numbers<[1], [0], [0], [1], [0, 0, 1, 1], [], []>} : vector<8x32xbf16>, vector<32x256xbf16>, vector<8x256xf32> -> vector<8x256xf32>
      %c256_i32 = arith.constant 256 : i32
      %15 = arith.muli %arg1, %c256_i32 : i32
      %16 = tpu.iota {dimensions = array<i32: 1>} : vector<8x256xi32>
      %17 = vector.broadcast %15 : i32 to vector<8x256xi32>
      %18 = arith.addi %17, %16 : vector<8x256xi32>
      %c0_9 = arith.constant 0 : index
      %c0_10 = arith.constant 0 : index
      %19 = vector.load %arg6[%c0_9, %c0_10] : memref<8x1xf32, #tpu.memory_space<vmem>>, vector<8x1xf32>
      %cst_11 = arith.constant dense<0xFF800000> : vector<8xf32>
      %20 = vector.multi_reduction <maximumf>, %14, %cst_11 [1] : vector<8x256xf32> to vector<8xf32>
      %21 = vector.shape_cast %20 : vector<8xf32> to vector<8x1xf32>
      %22 = arith.maximumf %19, %21 : vector<8x1xf32>
      %cst_12 = arith.constant 0xFF800000 : f32
      %23 = vector.broadcast %cst_12 : f32 to vector<8x1xf32>
      %24 = arith.cmpf oeq, %22, %23 : vector<8x1xf32>
      %25 = arith.subf %19, %22 : vector<8x1xf32>
      %26 = math.exp %25 : vector<8x1xf32>
      %cst_13 = arith.constant 0.000000e+00 : f32
      %27 = vector.broadcast %cst_13 : f32 to vector<8x1xf32>
      %28 = arith.select %24, %27, %26 : vector<8x1xi1>, vector<8x1xf32>
      %29 = vector.broadcast %22 : vector<8x1xf32> to vector<8x256xf32>
      %30 = arith.subf %14, %29 : vector<8x256xf32>
      %31 = math.exp %30 : vector<8x256xf32>
      %c0_14 = arith.constant 0 : index
      %c0_15 = arith.constant 0 : index
      %32 = vector.load %arg7[%c0_14, %c0_15] : memref<8x1xf32, #tpu.memory_space<vmem>>, vector<8x1xf32>
      %33 = arith.mulf %28, %32 : vector<8x1xf32>
      %cst_16 = arith.constant dense<0.000000e+00> : vector<8xf32>
      %34 = vector.multi_reduction <add>, %31, %cst_16 [1] : vector<8x256xf32> to vector<8xf32>
      %35 = vector.shape_cast %34 : vector<8xf32> to vector<8x1xf32>
      %36 = arith.addf %33, %35 : vector<8x1xf32>
      %c0_17 = arith.constant 0 : index
      %c0_18 = arith.constant 0 : index
      %37 = vector.load %arg7[%c0_17, %c0_18] : memref<8x1xf32, #tpu.memory_space<vmem>>, vector<8x1xf32>
      tpu.vector_store %arg7[%c0_17, %c0_18], %36 {strides = array<i32>} : memref<8x1xf32, #tpu.memory_space<vmem>>, vector<8x1xf32>,
      %c0_19 = arith.constant 0 : index
      %c0_20 = arith.constant 0 : index
      %38 = vector.load %arg6[%c0_19, %c0_20] : memref<8x1xf32, #tpu.memory_space<vmem>>, vector<8x1xf32>
      tpu.vector_store %arg6[%c0_19, %c0_20], %22 {strides = array<i32>} : memref<8x1xf32, #tpu.memory_space<vmem>>, vector<8x1xf32>,
      %c0_21 = arith.constant 0 : index
      %c0_22 = arith.constant 0 : index
      %39 = vector.load %arg8[%c0_21, %c0_22] : memref<8x1xf32, #tpu.memory_space<vmem>>, vector<8x1xf32>
      %c0_23 = arith.constant 0 : index
      %c0_24 = arith.constant 0 : index
      %40 = vector.load %arg4[%c0_23, %c0_24] : memref<8x1xi32, #tpu.memory_space<vmem>>, vector<8x1xi32>
      %41 = vector.broadcast %40 : vector<8x1xi32> to vector<8x256xi32>
      %42 = arith.cmpi eq, %18, %41 : vector<8x256xi32>
      %cst_25 = arith.constant 0.000000e+00 : f32
      %43 = vector.broadcast %cst_25 : f32 to vector<8x256xf32>
      %44 = arith.select %42, %14, %43 : vector<8x256xi1>, vector<8x256xf32>
      %cst_26 = arith.constant dense<0.000000e+00> : vector<8xf32>
      %45 = vector.multi_reduction <add>, %44, %cst_26 [1] : vector<8x256xf32> to vector<8xf32>
      %46 = vector.shape_cast %45 : vector<8xf32> to vector<8x1xf32>
      %47 = arith.addf %39, %46 : vector<8x1xf32>
      %c0_27 = arith.constant 0 : index
      %c0_28 = arith.constant 0 : index
      %48 = vector.load %arg8[%c0_27, %c0_28] : memref<8x1xf32, #tpu.memory_space<vmem>>, vector<8x1xf32>
      tpu.vector_store %arg8[%c0_27, %c0_28], %47 {strides = array<i32>} : memref<8x1xf32, #tpu.memory_space<vmem>>, vector<8x1xf32>,
    } else {
    }
    %c1_i32_2 = arith.constant 1 : i32
    %6 = arith.cmpi eq, %arg1, %c1_i32_2 : i32
    %7 = arith.extui %6 : i1 to i32
    %c0_i32_3 = arith.constant 0 : i32
    %8 = arith.cmpi ne, %7, %c0_i32_3 : i32
    scf.if %8 {
      %c0 = arith.constant 0 : index
      %c0_6 = arith.constant 0 : index
      %12 = vector.load %arg2[%c0, %c0_6] : memref<8x32xbf16, #tpu.memory_space<vmem>>, vector<8x32xbf16>
      %c0_7 = arith.constant 0 : index
      %c0_8 = arith.constant 0 : index
      %13 = vector.load %arg3[%c0_7, %c0_8] : memref<32x256xbf16, #tpu.memory_space<vmem>>, vector<32x256xbf16>
      %cst = arith.constant dense<0.000000e+00> : vector<8x256xf32>
      %14 = tpu.matmul %12, %13, %cst {dimension_numbers = #tpu.dot_dimension_numbers<[1], [0], [0], [1], [0, 0, 1, 1], [], []>} : vector<8x32xbf16>, vector<32x256xbf16>, vector<8x256xf32> -> vector<8x256xf32>
      %c256_i32 = arith.constant 256 : i32
      %15 = arith.muli %arg1, %c256_i32 : i32
      %16 = tpu.iota {dimensions = array<i32: 1>} : vector<8x256xi32>
      %17 = vector.broadcast %15 : i32 to vector<8x256xi32>
      %18 = arith.addi %17, %16 : vector<8x256xi32>
      %c384_i32 = arith.constant 384 : i32
      %19 = vector.broadcast %c384_i32 : i32 to vector<8x256xi32>
      %20 = arith.cmpi slt, %18, %19 : vector<8x256xi32>
      %cst_9 = arith.constant 0xFF800000 : f32
      %21 = vector.broadcast %cst_9 : f32 to vector<8x256xf32>
      %22 = arith.select %20, %14, %21 : vector<8x256xi1>, vector<8x256xf32>
      %c0_10 = arith.constant 0 : index
      %c0_11 = arith.constant 0 : index
      %23 = vector.load %arg6[%c0_10, %c0_11] : memref<8x1xf32, #tpu.memory_space<vmem>>, vector<8x1xf32>
      %cst_12 = arith.constant dense<0xFF800000> : vector<8xf32>
      %24 = vector.multi_reduction <maximumf>, %22, %cst_12 [1] : vector<8x256xf32> to vector<8xf32>
      %25 = vector.shape_cast %24 : vector<8xf32> to vector<8x1xf32>
      %26 = arith.maximumf %23, %25 : vector<8x1xf32>
      %cst_13 = arith.constant 0xFF800000 : f32
      %27 = vector.broadcast %cst_13 : f32 to vector<8x1xf32>
      %28 = arith.cmpf oeq, %26, %27 : vector<8x1xf32>
      %29 = arith.subf %23, %26 : vector<8x1xf32>
      %30 = math.exp %29 : vector<8x1xf32>
      %cst_14 = arith.constant 0.000000e+00 : f32
      %31 = vector.broadcast %cst_14 : f32 to vector<8x1xf32>
      %32 = arith.select %28, %31, %30 : vector<8x1xi1>, vector<8x1xf32>
      %33 = vector.broadcast %26 : vector<8x1xf32> to vector<8x256xf32>
      %34 = arith.subf %22, %33 : vector<8x256xf32>
      %35 = math.exp %34 : vector<8x256xf32>
      %c0_15 = arith.constant 0 : index
      %c0_16 = arith.constant 0 : index
      %36 = vector.load %arg7[%c0_15, %c0_16] : memref<8x1xf32, #tpu.memory_space<vmem>>, vector<8x1xf32>
      %37 = arith.mulf %32, %36 : vector<8x1xf32>
      %cst_17 = arith.constant dense<0.000000e+00> : vector<8xf32>
      %38 = vector.multi_reduction <add>, %35, %cst_17 [1] : vector<8x256xf32> to vector<8xf32>
      %39 = vector.shape_cast %38 : vector<8xf32> to vector<8x1xf32>
      %40 = arith.addf %37, %39 : vector<8x1xf32>
      %c0_18 = arith.constant 0 : index
      %c0_19 = arith.constant 0 : index
      %41 = vector.load %arg7[%c0_18, %c0_19] : memref<8x1xf32, #tpu.memory_space<vmem>>, vector<8x1xf32>
      tpu.vector_store %arg7[%c0_18, %c0_19], %40 {strides = array<i32>} : memref<8x1xf32, #tpu.memory_space<vmem>>, vector<8x1xf32>,
      %c0_20 = arith.constant 0 : index
      %c0_21 = arith.constant 0 : index
      %42 = vector.load %arg6[%c0_20, %c0_21] : memref<8x1xf32, #tpu.memory_space<vmem>>, vector<8x1xf32>
      tpu.vector_store %arg6[%c0_20, %c0_21], %26 {strides = array<i32>} : memref<8x1xf32, #tpu.memory_space<vmem>>, vector<8x1xf32>,
      %c0_22 = arith.constant 0 : index
      %c0_23 = arith.constant 0 : index
      %43 = vector.load %arg8[%c0_22, %c0_23] : memref<8x1xf32, #tpu.memory_space<vmem>>, vector<8x1xf32>
      %c0_24 = arith.constant 0 : index
      %c0_25 = arith.constant 0 : index
      %44 = vector.load %arg4[%c0_24, %c0_25] : memref<8x1xi32, #tpu.memory_space<vmem>>, vector<8x1xi32>
      %45 = vector.broadcast %44 : vector<8x1xi32> to vector<8x256xi32>
      %46 = arith.cmpi eq, %18, %45 : vector<8x256xi32>
      %cst_26 = arith.constant 0.000000e+00 : f32
      %47 = vector.broadcast %cst_26 : f32 to vector<8x256xf32>
      %48 = arith.select %46, %22, %47 : vector<8x256xi1>, vector<8x256xf32>
      %cst_27 = arith.constant dense<0.000000e+00> : vector<8xf32>
      %49 = vector.multi_reduction <add>, %48, %cst_27 [1] : vector<8x256xf32> to vector<8xf32>
      %50 = vector.shape_cast %49 : vector<8xf32> to vector<8x1xf32>
      %51 = arith.addf %43, %50 : vector<8x1xf32>
      %c0_28 = arith.constant 0 : index
      %c0_29 = arith.constant 0 : index
      %52 = vector.load %arg8[%c0_28, %c0_29] : memref<8x1xf32, #tpu.memory_space<vmem>>, vector<8x1xf32>
      tpu.vector_store %arg8[%c0_28, %c0_29], %51 {strides = array<i32>} : memref<8x1xf32, #tpu.memory_space<vmem>>, vector<8x1xf32>,
    } else {
    }
    %c1_i32_4 = arith.constant 1 : i32
    %9 = arith.cmpi eq, %arg1, %c1_i32_4 : i32
    %10 = arith.extui %9 : i1 to i32
    %c0_i32_5 = arith.constant 0 : i32
    %11 = arith.cmpi ne, %10, %c0_i32_5 : i32
    scf.if %11 {
      %c0 = arith.constant 0 : index
      %c0_6 = arith.constant 0 : index
      %12 = vector.load %arg6[%c0, %c0_6] : memref<8x1xf32, #tpu.memory_space<vmem>>, vector<8x1xf32>
      %c0_7 = arith.constant 0 : index
      %c0_8 = arith.constant 0 : index
      %13 = vector.load %arg7[%c0_7, %c0_8] : memref<8x1xf32, #tpu.memory_space<vmem>>, vector<8x1xf32>
      %14 = math.log %13 : vector<8x1xf32>
      %15 = arith.addf %12, %14 : vector<8x1xf32>
      %c0_9 = arith.constant 0 : index
      %c0_10 = arith.constant 0 : index
      %16 = vector.load %arg8[%c0_9, %c0_10] : memref<8x1xf32, #tpu.memory_space<vmem>>, vector<8x1xf32>
      %17 = arith.subf %15, %16 : vector<8x1xf32>
      %c0_11 = arith.constant 0 : index
      %c0_12 = arith.constant 0 : index
      %18 = vector.load %arg5[%c0_11, %c0_12] : memref<8x1xf32, #tpu.memory_space<vmem>>, vector<8x1xf32>
      tpu.vector_store %arg5[%c0_11, %c0_12], %17 {strides = array<i32>} : memref<8x1xf32, #tpu.memory_space<vmem>>, vector<8x1xf32>,
    } else {
    }
    return
  }
  func.func @transform_0(%arg0: i32, %arg1: i32) -> (i32, i32) {
    %c0_i32 = arith.constant 0 : i32
    %c0_i32_0 = arith.constant 0 : i32
    return %arg0, %c0_i32 : i32, i32
  }
  func.func @transform_1(%arg0: i32, %arg1: i32) -> (i32, i32) {
    %c0_i32 = arith.constant 0 : i32
    %c0_i32_0 = arith.constant 0 : i32
    return %c0_i32, %arg1 : i32, i32
  }
  func.func @transform_2(%arg0: i32, %arg1: i32) -> (i32, i32) {
    %c0_i32 = arith.constant 0 : i32
    %c0_i32_0 = arith.constant 0 : i32
    return %arg0, %c0_i32 : i32, i32
  }
  func.func @transform_3(%arg0: i32, %arg1: i32) -> (i32, i32) {
    %c0_i32 = arith.constant 0 : i32
    %c0_i32_0 = arith.constant 0 : i32
    return %arg0, %c0_i32 : i32, i32
  }
}

</mosaic_0001>

<llo_original>
// kernel: tpu_custom_call.1
$region0: #{tpu_custom_call.1}
  #allocation0 [shape = 'u32[]', space=smem, size = 0x4, offset = 0x4, fixed_abs, tag = 'smem constant byte address 0x4 - core index']
  #allocation1 [shape = 'u32[72,128]{1,0:T(1,128)}', space=vmem, size = 0x9000, scoped, tag = 'internal scratch']
  #allocation2 [shape = 'f32[8,1]{1,0:T(8,128)}', space=vmem, size = 0x1000, scoped, tag = 'scratch operand']
  #allocation3 [shape = 'f32[8,1]{1,0:T(8,128)}', space=vmem, size = 0x1000, scoped, tag = 'scratch operand']
  #allocation4 [shape = 'f32[8,1]{1,0:T(8,128)}', space=vmem, size = 0x1000, scoped, tag = 'scratch operand']
  %s0 = inlined_call_operand.vmem [shape: bf16[14,32], index: 0, kind: input, shape index: {}]
  %s1 = inlined_call_operand.hbm [shape: bf16[32,384], index: 1, kind: input, shape index: {}]
  %s2 = inlined_call_operand.vmem [shape: s32[14,1], index: 2, kind: input, shape index: {}]
  %s3 = inlined_call_operand.vmem [shape: f32[14,1], index: 3, kind: output, shape index: {}]
  %s4 = sld [smem:[#allocation0]]
  $region61: #{tpu_custom_call.1} parent=0
    _
  %s6 = ssub.s32 1, %s4
  %s7 = scalar_select 0, %s6, %s4
  $region1: #{tpu_custom_call.1} parent=0
    #allocation5 [shape = 'u8[32768]{0}', space=vmem, size = 0x8000, scoped, tag = 'input window, operand 1']
    #allocation6 [shape = 's32[2]{0}', space=sflag, size = 0x8, scoped, tag = 'scoped memory for tpu_custom_call.1']
    %8 = vsyncpa [#allocation6], 0
    %s9 = scalar_lea.sflag [#allocation6], 1
    %10 = vsyncpa %s9, 0
    loop: start=0, step=1, limit=6
    $region2: #{tpu_custom_call.1} parent=1 // loop_pre_header
      _
    $region3: #{tpu_custom_call.1} parent=1 // loop_header
      %s12 = sphi 0, %s16
      %p13 = scmp.ge.s32.totalorder %s12, 6
      %s19 = sphi 0, %s31
      %s20 = sphi 0, %s27
      %s21 = sphi 0, %s19
      %s22 = sphi 0, %s20
      %s23 = sphi 0, %s21
      %s24 = sphi 0, %s22
      %s34 = sphi 0, %s36
      %s37 = sphi 0, %s34
      %s38 = sphi 0, %s37
      %s54 = sphi 0, %s38
      %s60 = sphi 0, %s62
      %s63 = sphi 0, %s60
      %s64 = sphi 0, %s63
      %s80 = sphi 0, %s64
      %s86 = sphi 0, %s88
      %s89 = sphi 0, %s86
      %s90 = sphi 0, %s89
      %s106 = sphi 0, %s90
      %s112 = sphi 0, %s114
      %s115 = sphi 0, %s112
      %s116 = sphi 0, %s115
      %s132 = sphi 0, %s116
    $region4: #{tpu_custom_call.1} parent=1 // loop_header_branch
      %15 = sbr.rel (%p13) target = $region8
    $region5: #{tpu_custom_call.1} parent=1 // loop_body
      %s17 = ssub.s32 %s12, 1
      %s18 = ssub.s32 %s12, 2
      %s25 = sadd.s32 1, %s20
      %p26 = scmp.ge.s32.totalorder %s25, 2
      %s27 = scalar_select %p26, 0, %s25
      %s28 = sadd.s32 1, %s19
      %s29 = scalar_select %p26, %s28, %s19
      %p30 = scmp.ge.s32.totalorder %s29, 2
      %s31 = scalar_select %p30, 0, %s29
      %s32 = ssub.s32 %s19, %s31
      %p33 = scmp.eq.s32.totalorder %s32, 0
      %s35 = sadd.s32 %s34, 1
      %s36 = scalar_select %p33, %s34, %s35
      %p39 = pneg %p33
      %p40 = scmp.eq.s32.totalorder %s12, 3
      %p41 = por %p39, %p40
      %p42 = scmp.ne.s32.totalorder %s34, %s37
      %p43 = scmp.eq.s32.totalorder %s12, 0
      %p44 = por %p42, %p43
      %p45 = scmp.ne.s32.totalorder %s34, %s37
      %p46 = scmp.eq.s32.totalorder %s17, 3
      %p47 = por %p45, %p46
      %p48 = scmp.ne.s32.totalorder %s37, %s38
      %p49 = scmp.eq.s32.totalorder %s17, 0
      %p50 = por %p48, %p49
      %p51 = scmp.ne.s32.totalorder %s37, %s38
      %p52 = scmp.eq.s32.totalorder %s18, 3
      %p53 = por %p51, %p52
      %p55 = scmp.ne.s32.totalorder %s38, %s54
      %p56 = scmp.eq.s32.totalorder %s18, 0
      %p57 = por %p55, %p56
      %s58 = ssub.s32 %s20, %s27
      %p59 = scmp.eq.s32.totalorder %s58, 0
      %s61 = sadd.s32 %s60, 1
      %s62 = scalar_select %p59, %s60, %s61
      %p65 = pneg %p59
      %p66 = scmp.eq.s32.totalorder %s12, 3
      %p67 = por %p65, %p66
      %p68 = scmp.ne.s32.totalorder %s60, %s63
      %p69 = scmp.eq.s32.totalorder %s12, 0
      %p70 = por %p68, %p69
      %p71 = scmp.ne.s32.totalorder %s60, %s63
      %p72 = scmp.eq.s32.totalorder %s17, 3
      %p73 = por %p71, %p72
      %p74 = scmp.ne.s32.totalorder %s63, %s64
      %p75 = scmp.eq.s32.totalorder %s17, 0
      %p76 = por %p74, %p75
      %p77 = scmp.ne.s32.totalorder %s63, %s64
      %p78 = scmp.eq.s32.totalorder %s18, 3
      %p79 = por %p77, %p78
      %p81 = scmp.ne.s32.totalorder %s64, %s80
      %p82 = scmp.eq.s32.totalorder %s18, 0
      %p83 = por %p81, %p82
      %s84 = ssub.s32 %s19, %s31
      %p85 = scmp.eq.s32.totalorder %s84, 0
      %s87 = sadd.s32 %s86, 1
      %s88 = scalar_select %p85, %s86, %s87
      %p91 = pneg %p85
      %p92 = scmp.eq.s32.totalorder %s12, 3
      %p93 = por %p91, %p92
      %p94 = scmp.ne.s32.totalorder %s86, %s89
      %p95 = scmp.eq.s32.totalorder %s12, 0
      %p96 = por %p94, %p95
      %p97 = scmp.ne.s32.totalorder %s86, %s89
      %p98 = scmp.eq.s32.totalorder %s17, 3
      %p99 = por %p97, %p98
      %p100 = scmp.ne.s32.totalorder %s89, %s90
      %p101 = scmp.eq.s32.totalorder %s17, 0
      %p102 = por %p100, %p101
      %p103 = scmp.ne.s32.totalorder %s89, %s90
      %p104 = scmp.eq.s32.totalorder %s18, 3
      %p105 = por %p103, %p104
      %p107 = scmp.ne.s32.totalorder %s90, %s106
      %p108 = scmp.eq.s32.totalorder %s18, 0
      %p109 = por %p107, %p108
      %s110 = ssub.s32 %s19, %s31
      %p111 = scmp.eq.s32.totalorder %s110, 0
      %s113 = sadd.s32 %s112, 1
      %s114 = scalar_select %p111, %s112, %s113
      %p117 = pneg %p111
      %p118 = scmp.eq.s32.totalorder %s12, 3
      %p119 = por %p117, %p118
      %p120 = scmp.ne.s32.totalorder %s112, %s115
      %p121 = scmp.eq.s32.totalorder %s12, 0
      %p122 = por %p120, %p121
      %p123 = scmp.ne.s32.totalorder %s112, %s115
      %p124 = scmp.eq.s32.totalorder %s17, 3
      %p125 = por %p123, %p124
      %p126 = scmp.ne.s32.totalorder %s115, %s116
      %p127 = scmp.eq.s32.totalorder %s17, 0
      %p128 = por %p126, %p127
      %p129 = scmp.ne.s32.totalorder %s115, %s116
      %p130 = scmp.eq.s32.totalorder %s18, 3
      %p131 = por %p129, %p130
      %p133 = scmp.ne.s32.totalorder %s116, %s132
      %p134 = scmp.eq.s32.totalorder %s18, 0
      %p135 = por %p133, %p134
      %p136 = scmp.le.s32.totalorder 1, %s12
      %p137 = scmp.lt.s32.totalorder %s12, 5
      %p138 = pnand %p136, %p137
      %p139 = pneg %p138
      // Predicated region
      $region9: #{tpu_custom_call.1} parent=5 // pred_check
        _
      $region10: #{tpu_custom_call.1} parent=5 // pred_check_branch
        %141 = sbr.rel (%p138) target = $region12
      $region11: #{tpu_custom_call.1} parent=5 // pred_region
        %s142 = ssub.s32 %s12, 1
      $region12: #{tpu_custom_call.1} parent=5 // pred_fallthru
        _
      %p143 = scmp.lt.s32.totalorder %s12, 4
      // Predicated region
      $region13: #{tpu_custom_call.1} parent=5 // pred_check
        %p144 = pneg %p143
      $region14: #{tpu_custom_call.1} parent=5 // pred_check_branch
        %146 = sbr.rel (%p144) target = $region16
      $region15: #{tpu_custom_call.1} parent=5 // pred_region
        // Predicated region
        $region17: #{tpu_custom_call.1} parent=15 // pred_check
          %p147 = pneg %p44
        $region18: #{tpu_custom_call.1} parent=15 // pred_check_branch
          %149 = sbr.rel (%p147) target = $region20
        $region19: #{tpu_custom_call.1} parent=15 // pred_region
          %p150 = scmp.lt.s32.totalorder %s19, 1
          %s151 = scalar_select %p150, %s19, 1
          %s152 = smul.addr %s151, 4
          %s153 = scalar_lea.vmem %s0, %s152
        $region20: #{tpu_custom_call.1} parent=15 // pred_fallthru
          _
        // Predicated region
        $region21: #{tpu_custom_call.1} parent=15 // pred_check
          %p154 = pneg %p70
        $region22: #{tpu_custom_call.1} parent=15 // pred_check_branch
          %156 = sbr.rel (%p154) target = $region24
        $region23: #{tpu_custom_call.1} parent=15 // pred_region
          %s157 = sand.u32 %s60, 1
          %s158 = scalar_lea.sflag [#allocation6], %s157
          %s159 = sand.u32 %s60, 1
          %s160 = smul.addr %s159, 32
          %s161 = scalar_lea.vmem [#allocation5], %s160
          %s162 = smul.u32 2, %s20
          %s163 = ssub.s32 3, %s162
          %p164 = scmp.lt.s32.totalorder %s163, 2
          %s165 = scalar_select %p164, %s163, 2
          %s166 = smul.u32 16, %s165
          %s167 = ssub.s32 32, %s166
          %s168 = sshll.u32 %s167, 4
          %169 = vsyncadd %s158, %s168
          %p170 = scmp.ne.s32.totalorder 0, %s166
          %s171 = smul.addr %s162, 4
          %s172 = scalar_lea.hbm %s1, %s171
          %s173 = smul.u32 %s165, 4
          %s174 = smul.u32 %s173, 4
          %s175 = sshll.u32 %s172, 4
          %s176 = int_to_ptr.hbm [resolvable:$true] %s175
          %s177 = sshll.u32 %s161, 4
          %s178 = int_to_ptr.vmem [resolvable:$true] %s177
          %s179 = sshll.u32 %s174, 4
          %183 = dma.hbm_to_vmem [thread:$0]  (%p170), %s176, %s179, %s178, %s158, 192, 128, %s173
        $region24: #{tpu_custom_call.1} parent=15 // pred_fallthru
          _
        // Predicated region
        $region25: #{tpu_custom_call.1} parent=15 // pred_check
          %p184 = pneg %p96
        $region26: #{tpu_custom_call.1} parent=15 // pred_check_branch
          %186 = sbr.rel (%p184) target = $region28
        $region27: #{tpu_custom_call.1} parent=15 // pred_region
          %p187 = scmp.lt.s32.totalorder %s19, 1
          %s188 = scalar_select %p187, %s19, 1
          %s189 = smul.addr %s188, 8
          %s190 = scalar_lea.vmem %s2, %s189
        $region28: #{tpu_custom_call.1} parent=15 // pred_fallthru
          _
      $region16: #{tpu_custom_call.1} parent=5 // pred_fallthru
        _
      %p191 = scmp.le.s32.totalorder 1, %s12
      %p192 = scmp.lt.s32.totalorder %s12, 5
      %p193 = pnand %p191, %p192
      %p194 = pneg %p193
      // Predicated region
      $region29: #{tpu_custom_call.1} parent=5 // pred_check
        _
      $region30: #{tpu_custom_call.1} parent=5 // pred_check_branch
        %196 = sbr.rel (%p193) target = $region32
      $region31: #{tpu_custom_call.1} parent=5 // pred_region
        %s197 = ssub.s32 %s12, 1
        %s198 = sand.u32 %s63, 1
        %s199 = scalar_lea.sflag [#allocation6], %s198
        %s200 = sand.u32 %s63, 1
        %s201 = smul.addr %s200, 32
        %s202 = scalar_lea.vmem [#allocation5], %s201
        // Predicated region
        $region33: #{tpu_custom_call.1} parent=31 // pred_check
          %p203 = pneg %p76
        $region34: #{tpu_custom_call.1} parent=31 // pred_check_branch
          %205 = sbr.rel (%p203) target = $region36
        $region35: #{tpu_custom_call.1} parent=31 // pred_region
          %207 = dma.done %s199, 512
        $region36: #{tpu_custom_call.1} parent=31 // pred_fallthru
          _
        %p208 = scmp.lt.s32.totalorder %s21, 1
        %s209 = scalar_select %p208, %s21, 1
        %s210 = smul.addr %s209, 4
        %s211 = scalar_lea.vmem %s0, %s210
        %p212 = pneg %p50
        %p213 = pneg %p47
        %s214 = sand.u32 %s63, 1
        %s215 = scalar_lea.sflag [#allocation6], %s214
        %s216 = sand.u32 %s63, 1
        %s217 = smul.addr %s216, 32
        %s218 = scalar_lea.vmem [#allocation5], %s217
        %p219 = pneg %p76
        %p220 = pneg %p73
        %p221 = scmp.lt.s32.totalorder %s21, 1
        %s222 = scalar_select %p221, %s21, 1
        %s223 = smul.addr %s222, 8
        %s224 = scalar_lea.vmem %s2, %s223
        %p225 = pneg %p102
        %p226 = pneg %p99
        %p227 = pneg %p128
        %p228 = pneg %p125
        %p229 = scmp.lt.s32.totalorder %s21, 1
        %s230 = scalar_select %p229, %s21, 1
        %s231 = smul.addr %s230, 8
        %s232 = scalar_lea.vmem %s3, %s231
        %p233 = scmp.lt.s32.totalorder %s21, 1
        %s234 = scalar_select %p233, %s21, 1
        %s235 = smul.addr %s234, 4
        %s236 = scalar_lea.vmem %s0, %s235
        %s237 = smul.u32 2, %s22
        %s238 = ssub.s32 3, %s237
        %p239 = scmp.lt.s32.totalorder %s238, 2
        %s240 = scalar_select %p239, %s238, 2
        %s241 = smul.u32 16, %s240
        %p242 = scmp.lt.s32.totalorder %s21, 1
        %s243 = scalar_select %p242, %s21, 1
        %s244 = smul.addr %s243, 8
        %s245 = scalar_lea.vmem %s2, %s244
        %p246 = scmp.lt.s32.totalorder %s21, 1
        %s247 = scalar_select %p246, %s21, 1
        %s248 = smul.addr %s247, 8
        %s249 = scalar_lea.vmem %s3, %s248
        %p251 = scmp.eq.s32.totalorder %s22, 0
        // Predicated region
        $region37: #{tpu_custom_call.1} parent=31 // pred_check
          %p252 = pneg %p251
        $region38: #{tpu_custom_call.1} parent=31 // pred_check_branch
          %254 = sbr.rel (%p252) target = $region40
        $region39: #{tpu_custom_call.1} parent=31 // pred_region
          %vm255 = vcmask 7168
          %256 = vst.msk [vmem:[#allocation2] sm:$0xff] %vm255, -inf
          %257 = vst.msk [vmem:[#allocation3] sm:$0xff] %vm255, 0.0
          %258 = vst.msk [vmem:[#allocation4] sm:$0xff] %vm255, 0.0
        $region40: #{tpu_custom_call.1} parent=31 // pred_fallthru
          _
        %p259 = scmp.lt.s32.totalorder %s22, 1
        // Predicated region
        $region41: #{tpu_custom_call.1} parent=31 // pred_check
          %p260 = pneg %p259
        $region42: #{tpu_custom_call.1} parent=31 // pred_check_branch
          %262 = sbr.rel (%p260) target = $region44
        $region43: #{tpu_custom_call.1} parent=31 // pred_region
          %v263 = vld [vmem:[%s236] sm:$0xf]
          %v264 = vld [vmem:[%s202] sm:$0xff]
          %v265 = vld [vmem:[%s202 + $0x8] sm:$0xff]
          %v266 = vld [vmem:[%s202 + $0x10] sm:$0xff]
          %v267 = vld [vmem:[%s202 + $0x18] sm:$0xff]
          %v272 = vunpack.c.l.b16 %v264
          %v273 = vunpack.c.h.b16 %v264
          %v274 = vunpack.c.l.b16 %v265
          %v275 = vunpack.c.h.b16 %v265
          %v276 = vunpack.c.l.b16 %v266
          %v277 = vunpack.c.h.b16 %v266
          %v278 = vunpack.c.l.b16 %v267
          %v279 = vunpack.c.h.b16 %v267
          %v280 = vpack.c.b16 %v274, %v272
          %v281 = vpack.c.b16 %v275, %v273
          %v282 = vpack.c.b16 %v278, %v276
          %v283 = vpack.c.b16 %v279, %v277
          %vm288 = vcmask 261120
          %v290 = vsel %vm288, %v263, 0
          %292 = vmatpush.bf16.msra.mxu0 0
          %293 = vmatpush.bf16.msra.mxu0 0
          %294 = vmatpush.bf16.msra.mxu0 0
          %295 = vmatpush.bf16.msra.mxu0 0
          %296 = vmatpush.bf16.msra.mxu0 0
          %297 = vmatpush.bf16.msra.mxu0 0
          %298 = vmatpush.bf16.msra.mxu0 %v282
          %299 = vmatpush.bf16.msra.mxu0 %v280
          %300 = vmatmul.bf16.gmra.mxu0 %v290
          %v301 = vpop.f32.mrf.mxu0
          %v302 = vadd.f32 0.0, %v301
          %v303 = vpop.f32.mrf.mxu0
          %304 = vdwg.mxu0
          %305 = vmatpush.bf16.msra.mxu0 0
          %306 = vmatpush.bf16.msra.mxu0 0
          %307 = vmatpush.bf16.msra.mxu0 0
          %308 = vmatpush.bf16.msra.mxu0 0
          %309 = vmatpush.bf16.msra.mxu0 0
          %310 = vmatpush.bf16.msra.mxu0 0
          %311 = vmatpush.bf16.msra.mxu0 %v283
          %312 = vmatpush.bf16.msra.mxu0 %v281
          %313 = vmatmul.bf16.gmra.mxu0 %v290
          %v314 = vpop.f32.mrf.mxu0
          %v315 = vadd.f32 0.0, %v314
          %v316 = vpop.f32.mrf.mxu0
          %317 = vdwg.mxu0
          %s318 = smul.u32 %s22, 256
          %v319 = vlaneseq
          %v320 = vand.u32 %v319, 127
          %v321 = vadd.s32 %v320, 128
          %v322 = vstv %s318
          %v323 = vadd.s32 %v322, %v320
          %v324 = vadd.s32 %v322, %v321
          %v325 = vld [vmem:[#allocation2] sm:$0xff]
          %v326 = vmax.f32 %v302, %v315
          %327 = vmax.xlane.f32.xlu0 %v326
          %v328 = vpop.xlane.xlu0 %327
          %v329 = vmax.f32 %v325, %v328
          %vm330 = vcmp.eq.f32.partialorder %v329, -inf
          %v331 = vsub.f32 %v325, %v329
          %v332 = vmul.f32 %v331, 1.442695
          %v333 = vpow.pop %v332
          %v334 = vsel %vm330, 0.0, %v333
          %336 = vset.pattern.permute.xlu0 0
          %337 = vperm.xlu0 %336, %v329
          %v338 = vpop.permute.xlu0 %337
          %v340 = vsub.f32 %v302, %v338
          %v341 = vsub.f32 %v315, %v338
          %v342 = vmul.f32 %v340, 1.442695
          %v343 = vpow.pop %v342
          %v344 = vmul.f32 %v341, 1.442695
          %v345 = vpow.pop %v344
          %v346 = vld [vmem:[#allocation3] sm:$0xff]
          %v347 = vmul.f32 %v334, %v346
          %v348 = vadd.f32 %v343, %v345
          %349 = vadd.xlane.f32.xlu0 %v348
          %v350 = vpop.xlane.xlu0 %349
          %v351 = vadd.f32 %v347, %v350
          %vm352 = vcmask 7168
          %353 = vst.msk [vmem:[#allocation3] sm:$0xff] %vm352, %v351
          %354 = vst.msk [vmem:[#allocation2] sm:$0xff] %vm352, %v329
          %v355 = vld [vmem:[#allocation4] sm:$0xff]
          %v356 = vld [vmem:[%s245] sm:$0xff]
          %357 = vset.pattern.permute.xlu0 0
          %358 = vperm.xlu0 %357, %v356
          %v359 = vpop.permute.xlu0 %358
          %vm360 = vcmp.eq.s32.totalorder %v323, %v359
          %vm361 = vcmp.eq.s32.totalorder %v324, %v359
          %v362 = vsel %vm360, %v302, 0.0
          %v363 = vsel %vm361, %v315, 0.0
          %v364 = vadd.f32 %v362, %v363
          %365 = vadd.xlane.f32.xlu0 %v364
          %v366 = vpop.xlane.xlu0 %365
          %v367 = vadd.f32 %v355, %v366
          %368 = vst.msk [vmem:[#allocation4] sm:$0xff] %vm352, %v367
        $region44: #{tpu_custom_call.1} parent=31 // pred_fallthru
          _
        %p369 = scmp.eq.s32.totalorder %s22, 1
        // Predicated region
        $region45: #{tpu_custom_call.1} parent=31 // pred_check
          %p370 = pneg %p369
        $region46: #{tpu_custom_call.1} parent=31 // pred_check_branch
          %372 = sbr.rel (%p370) target = $region48
        $region47: #{tpu_custom_call.1} parent=31 // pred_region
          %v373 = vld [vmem:[%s236] sm:$0xf]
          %v374 = vld [vmem:[%s202] sm:$0xff]
          %v375 = vld [vmem:[%s202 + $0x8] sm:$0xff]
          %v376 = vld [vmem:[%s202 + $0x10] sm:$0xff]
          %v377 = vld [vmem:[%s202 + $0x18] sm:$0xff]
          %v382 = vunpack.c.l.b16 %v374
          %v383 = vunpack.c.h.b16 %v374
          %v384 = vunpack.c.l.b16 %v375
          %v385 = vunpack.c.h.b16 %v375
          %v386 = vunpack.c.l.b16 %v376
          %v387 = vunpack.c.h.b16 %v376
          %v388 = vunpack.c.l.b16 %v377
          %v389 = vunpack.c.h.b16 %v377
          %v390 = vpack.c.b16 %v384, %v382
          %v391 = vpack.c.b16 %v385, %v383
          %v392 = vpack.c.b16 %v388, %v386
          %v393 = vpack.c.b16 %v389, %v387
          %vm398 = vcmask 261120
          %v400 = vsel %vm398, %v373, 0
          %402 = vmatpush.bf16.msra.mxu0 0
          %403 = vmatpush.bf16.msra.mxu0 0
          %404 = vmatpush.bf16.msra.mxu0 0
          %405 = vmatpush.bf16.msra.mxu0 0
          %406 = vmatpush.bf16.msra.mxu0 0
          %407 = vmatpush.bf16.msra.mxu0 0
          %408 = vmatpush.bf16.msra.mxu0 %v392
          %409 = vmatpush.bf16.msra.mxu0 %v390
          %410 = vmatmul.bf16.gmra.mxu0 %v400
          %v411 = vpop.f32.mrf.mxu0
          %v412 = vadd.f32 0.0, %v411
          %v413 = vpop.f32.mrf.mxu0
          %414 = vdwg.mxu0
          %415 = vmatpush.bf16.msra.mxu0 0
          %416 = vmatpush.bf16.msra.mxu0 0
          %417 = vmatpush.bf16.msra.mxu0 0
          %418 = vmatpush.bf16.msra.mxu0 0
          %419 = vmatpush.bf16.msra.mxu0 0
          %420 = vmatpush.bf16.msra.mxu0 0
          %421 = vmatpush.bf16.msra.mxu0 %v393
          %422 = vmatpush.bf16.msra.mxu0 %v391
          %423 = vmatmul.bf16.gmra.mxu0 %v400
          %v424 = vpop.f32.mrf.mxu0
          %v425 = vadd.f32 0.0, %v424
          %v426 = vpop.f32.mrf.mxu0
          %427 = vdwg.mxu0
          %s428 = smul.u32 %s22, 256
          %v429 = vlaneseq
          %v430 = vand.u32 %v429, 127
          %v431 = vadd.s32 %v430, 128
          %v432 = vstv %s428
          %v433 = vadd.s32 %v432, %v430
          %v434 = vadd.s32 %v432, %v431
          %vm435 = vcmp.lt.s32.totalorder %v433, 384
          %vm436 = vcmp.lt.s32.totalorder %v434, 384
          %v437 = vsel %vm435, %v412, -inf
          %v438 = vsel %vm436, %v425, -inf
          %v439 = vld [vmem:[#allocation2] sm:$0xff]
          %v440 = vmax.f32 %v437, %v438
          %441 = vmax.xlane.f32.xlu0 %v440
          %v442 = vpop.xlane.xlu0 %441
          %v443 = vmax.f32 %v439, %v442
          %vm444 = vcmp.eq.f32.partialorder %v443, -inf
          %v445 = vsub.f32 %v439, %v443
          %v446 = vmul.f32 %v445, 1.442695
          %v447 = vpow.pop %v446
          %v448 = vsel %vm444, 0.0, %v447
          %450 = vset.pattern.permute.xlu0 0
          %451 = vperm.xlu0 %450, %v443
          %v452 = vpop.permute.xlu0 %451
          %v454 = vsub.f32 %v437, %v452
          %v455 = vsub.f32 %v438, %v452
          %v456 = vmul.f32 %v454, 1.442695
          %v457 = vpow.pop %v456
          %v458 = vmul.f32 %v455, 1.442695
          %v459 = vpow.pop %v458
          %v460 = vld [vmem:[#allocation3] sm:$0xff]
          %v461 = vmul.f32 %v448, %v460
          %v462 = vadd.f32 %v457, %v459
          %463 = vadd.xlane.f32.xlu0 %v462
          %v464 = vpop.xlane.xlu0 %463
          %v465 = vadd.f32 %v461, %v464
          %vm466 = vcmask 7168
          %467 = vst.msk [vmem:[#allocation3] sm:$0xff] %vm466, %v465
          %468 = vst.msk [vmem:[#allocation2] sm:$0xff] %vm466, %v443
          %v469 = vld [vmem:[#allocation4] sm:$0xff]
          %v470 = vld [vmem:[%s245] sm:$0xff]
          %471 = vset.pattern.permute.xlu0 0
          %472 = vperm.xlu0 %471, %v470
          %v473 = vpop.permute.xlu0 %472
          %vm474 = vcmp.eq.s32.totalorder %v433, %v473
          %vm475 = vcmp.eq.s32.totalorder %v434, %v473
          %v476 = vsel %vm474, %v437, 0.0
          %v477 = vsel %vm475, %v438, 0.0
          %v478 = vadd.f32 %v476, %v477
          %479 = vadd.xlane.f32.xlu0 %v478
          %v480 = vpop.xlane.xlu0 %479
          %v481 = vadd.f32 %v469, %v480
          %482 = vst.msk [vmem:[#allocation4] sm:$0xff] %vm466, %v481
          %v483 = vld [vmem:[#allocation2] sm:$0xff]
          %v484 = vld [vmem:[#allocation3] sm:$0xff]
          %v485 = vlog2.pop %v484
          %v486 = vmul.f32 %v485, 0.6931472
          %v487 = vadd.f32 %v483, %v486
          %v488 = vld [vmem:[#allocation4] sm:$0xff]
          %v489 = vsub.f32 %v487, %v488
          %490 = vst.msk [vmem:[%s249] sm:$0xff] %vm466, %v489
        $region48: #{tpu_custom_call.1} parent=31 // pred_fallthru
          _
        %p491 = scmp.lt.s32.totalorder %s21, 1
        %s492 = scalar_select %p491, %s21, 1
        %s493 = smul.addr %s492, 8
        %s494 = scalar_lea.vmem %s3, %s493
        // Predicated region
        $region49: #{tpu_custom_call.1} parent=31 // pred_check
          %p495 = pneg %p125
        $region50: #{tpu_custom_call.1} parent=31 // pred_check_branch
          %497 = sbr.rel (%p495) target = $region52
        $region51: #{tpu_custom_call.1} parent=31 // pred_region
          _
        $region52: #{tpu_custom_call.1} parent=31 // pred_fallthru
          _
      $region32: #{tpu_custom_call.1} parent=5 // pred_fallthru
        _
      %p498 = scmp.le.s32.totalorder 2, %s12
      // Predicated region
      $region53: #{tpu_custom_call.1} parent=5 // pred_check
        %p499 = pneg %p498
      $region54: #{tpu_custom_call.1} parent=5 // pred_check_branch
        %501 = sbr.rel (%p499) target = $region56
      $region55: #{tpu_custom_call.1} parent=5 // pred_region
        %s502 = ssub.s32 %s12, 2
        // Predicated region
        $region57: #{tpu_custom_call.1} parent=55 // pred_check
          %p503 = pneg %p131
        $region58: #{tpu_custom_call.1} parent=55 // pred_check_branch
          %505 = sbr.rel (%p503) target = $region60
        $region59: #{tpu_custom_call.1} parent=55 // pred_region
          %p506 = scmp.lt.s32.totalorder %s23, 1
          %s507 = scalar_select %p506, %s23, 1
          %s508 = smul.addr %s507, 8
          %s509 = scalar_lea.vmem %s3, %s508
        $region60: #{tpu_custom_call.1} parent=55 // pred_fallthru
          _
      $region56: #{tpu_custom_call.1} parent=5 // pred_fallthru
        _
    $region6: #{tpu_custom_call.1} parent=1 // loop_footer
      %s16 = sadd.s32 1, %s12
    $region7: #{tpu_custom_call.1} parent=1 // loop_footer_branch
      %11 = sbr.rel target = $region3
    $region8: #{tpu_custom_call.1} parent=1 // loop_exit
      _
    %510 = vsyncpa [#allocation6], 1
    %s511 = scalar_lea.sflag [#allocation6], 1
    %512 = vsyncpa %s511, 1

</llo_original>
